<compile_context>
chip_gen: v7x
topology: tpu7x:2x2x1
jax: 0.10.0
libtpu: 0.0.40
codegen_flags: <defaults>
</compile_context>

<pallas_src>
import jax
import jax.numpy as jnp
from jax.experimental import pallas as pl
from jax.experimental.pallas import tpu as pltpu


D_IN, D_H1, D_H2, D_OUT = 32, 64, 128, 32


def _round_up(a, m):
    return (a + m - 1) // m * m


def _point_decoder_kernel(x_ref, w1_ref, w2_ref, w3_ref, b_ref, o_ref):
    # x_ref: (TB, 32)   w1: (32, 64)   w2: (64, 128)   w3: (128, 32)
    # b_ref: (3, 128) lane-padded bias slab: row0[:64]=b1, row1[:128]=b2, row2[:32]=b3
    x = x_ref[...]
    b1 = b_ref[0:1, :D_H1]
    b2 = b_ref[1:2, :D_H2]
    b3 = b_ref[2:3, :D_OUT]

    h = jnp.maximum(
        jnp.dot(x, w1_ref[...], preferred_element_type=jnp.float32) + b1, 0.0)
    h = jnp.maximum(
        jnp.dot(h, w2_ref[...], preferred_element_type=jnp.float32) + b2, 0.0)
    o_ref[...] = jnp.dot(h, w3_ref[...], preferred_element_type=jnp.float32) + b3


def _pick_block_b(batch):
    """Batch-tile size: multiple of 8; cap at 256 rows (full MXU M on v6e/v7x),
    which also keeps the grid >= 2 for realistic batches (megacore on v7x)."""
    b8 = _round_up(max(batch, 1), 8)
    return b8 if b8 <= 256 else 256


def point_decoder_forward(x, params):
    """x: (B, 32) float32. Returns (B, 32) float32 = fc3(relu(fc2(relu(fc1(x)))))."""
    B = x.shape[0]
    tb = _pick_block_b(B)
    b_pad = _round_up(B, tb)

    x_p = jnp.pad(x.astype(jnp.float32), ((0, b_pad - B), (0, 0)))

    # Pack the three biases into one lane-aligned (3, 128) slab (fewer DMA'd buffers).
    bias_pack = jnp.zeros((3, 128), jnp.float32)
    bias_pack = bias_pack.at[0, :D_H1].set(params["b1"])
    bias_pack = bias_pack.at[1, :D_H2].set(params["b2"])
    bias_pack = bias_pack.at[2, :D_OUT].set(params["b3"])

    grid = (b_pad // tb,)

    out = pl.pallas_call(
        _point_decoder_kernel,
        out_shape=jax.ShapeDtypeStruct((b_pad, D_OUT), jnp.float32),
        grid_spec=pltpu.PrefetchScalarGridSpec(
            num_scalar_prefetch=0,
            grid=grid,
            in_specs=[
                pl.BlockSpec((tb, D_IN), lambda i: (i, 0)),      # batch tile
                pl.BlockSpec((D_IN, D_H1), lambda i: (0, 0)),    # w1 (resident)
                pl.BlockSpec((D_H1, D_H2), lambda i: (0, 0)),    # w2 (resident)
                pl.BlockSpec((D_H2, D_OUT), lambda i: (0, 0)),   # w3 (resident)
                pl.BlockSpec((3, 128), lambda i: (0, 0)),        # packed biases
            ],
            out_specs=pl.BlockSpec((tb, D_OUT), lambda i: (i, 0)),
        ),
        compiler_params=pltpu.CompilerParams(
            dimension_semantics=("parallel",),
        ),
    )(x_p, params["w1"], params["w2"], params["w3"], bias_pack)

    return out[:B]


point_decoder_forward = jax.jit(point_decoder_forward)


def init_params(key):
    """Deterministic synthetic parameters. Linear weights stored transposed: (in, out)."""
    k1, k2, k3, k4, k5, k6 = jax.random.split(key, 6)
    p = {
        "w1": jax.random.normal(k1, (D_IN, D_H1), jnp.float32) / jnp.sqrt(D_IN),
        "w2": jax.random.normal(k2, (D_H1, D_H2), jnp.float32) / jnp.sqrt(D_H1),
        "w3": jax.random.normal(k3, (D_H2, D_OUT), jnp.float32) / jnp.sqrt(D_H2),
        "b1": 0.05 * jax.random.normal(k4, (D_H1,), jnp.float32),
        "b2": 0.05 * jax.random.normal(k5, (D_H2,), jnp.float32),
        "b3": 0.05 * jax.random.normal(k6, (D_OUT,), jnp.float32),
    }
    return p


def ref_forward(x, p):
    """Pure-JAX reference matching the PyTorch forward."""
    h = jnp.maximum(x @ p["w1"] + p["b1"], 0.0)
    h = jnp.maximum(h @ p["w2"] + p["b2"], 0.0)
    return h @ p["w3"] + p["b3"]


if __name__ == "__main__":
    key = jax.random.PRNGKey(0)
    k_x, k_p, k_x2 = jax.random.split(key, 3)
    params = init_params(k_p)

    # Small case implied by the module: batch=2, hidden=32.
    B = 2
    x = jax.random.normal(k_x, (B, D_IN), dtype=jnp.float32)
    out = point_decoder_forward(x, params)
    jax.block_until_ready(out)
    ref = ref_forward(x, params)
    assert out.shape == (B, D_OUT)
    assert jnp.allclose(out, ref, atol=1e-4, rtol=1e-4)

    # Larger case to exercise batch tiling, padding and the multi-step parallel grid.
    B2 = 300
    x2 = jax.random.normal(k_x2, (B2, D_IN), dtype=jnp.float32)
    out2 = point_decoder_forward(x2, params)
    jax.block_until_ready(out2)
    ref2 = ref_forward(x2, params)
    assert out2.shape == (B2, D_OUT)
    assert jnp.allclose(out2, ref2, atol=1e-4, rtol=1e-4)

    print("KERNEL_OK")
</pallas_src>

<mosaic_0001>
module attributes {stable_mosaic.version = 11 : i64} {
  func.func @_point_decoder_kernel(%arg0: i32, %arg1: memref<8x32xf32, #tpu.memory_space<vmem>>, %arg2: memref<32x64xf32, #tpu.memory_space<vmem>>, %arg3: memref<64x128xf32, #tpu.memory_space<vmem>>, %arg4: memref<128x32xf32, #tpu.memory_space<vmem>>, %arg5: memref<3x128xf32, #tpu.memory_space<vmem>>, %arg6: memref<8x32xf32, #tpu.memory_space<vmem>>) attributes {dimension_semantics = [#tpu.dimension_semantics<parallel>], iteration_bounds = array<i64: 1>, scalar_prefetch = 0 : i64, scratch_operands = 0 : i64, tpu.core_type = #tpu.core_type<tc>, window_params = [{transform_indices = @transform_0, window_bounds = array<i64: 8, 32>}, {pipeline_mode = #tpu.pipeline_mode<synchronous>, transform_indices = @transform_1, window_bounds = array<i64: 32, 64>}, {pipeline_mode = #tpu.pipeline_mode<synchronous>, transform_indices = @transform_2, window_bounds = array<i64: 64, 128>}, {pipeline_mode = #tpu.pipeline_mode<synchronous>, transform_indices = @transform_3, window_bounds = array<i64: 128, 32>}, {pipeline_mode = #tpu.pipeline_mode<synchronous>, transform_indices = @transform_4, window_bounds = array<i64: 3, 128>}, {transform_indices = @transform_5, window_bounds = array<i64: 8, 32>}]} {
    %c0 = arith.constant 0 : index
    %c0_0 = arith.constant 0 : index
    %0 = vector.load %arg1[%c0, %c0_0] : memref<8x32xf32, #tpu.memory_space<vmem>>, vector<8x32xf32>
    %c0_1 = arith.constant 0 : index
    %c0_2 = arith.constant 0 : index
    %1 = vector.load %arg5[%c0_1, %c0_2] : memref<3x128xf32, #tpu.memory_space<vmem>>, vector<1x64xf32>
    %c1 = arith.constant 1 : index
    %c0_3 = arith.constant 0 : index
    %2 = vector.load %arg5[%c1, %c0_3] : memref<3x128xf32, #tpu.memory_space<vmem>>, vector<1x128xf32>
    %c2 = arith.constant 2 : index
    %c0_4 = arith.constant 0 : index
    %3 = vector.load %arg5[%c2, %c0_4] : memref<3x128xf32, #tpu.memory_space<vmem>>, vector<1x32xf32>
    %c0_5 = arith.constant 0 : index
    %c0_6 = arith.constant 0 : index
    %4 = vector.load %arg2[%c0_5, %c0_6] : memref<32x64xf32, #tpu.memory_space<vmem>>, vector<32x64xf32>
    %cst = arith.constant dense<0.000000e+00> : vector<8x64xf32>
    %5 = tpu.matmul %0, %4, %cst {dimension_numbers = #tpu.dot_dimension_numbers<[1], [0], [0], [1], [0, 0, 1, 1], [], []>} : vector<8x32xf32>, vector<32x64xf32>, vector<8x64xf32> -> vector<8x64xf32>
    %6 = vector.broadcast %1 : vector<1x64xf32> to vector<8x64xf32>
    %7 = arith.addf %5, %6 : vector<8x64xf32>
    %cst_7 = arith.constant 0.000000e+00 : f32
    %8 = vector.broadcast %cst_7 : f32 to vector<8x64xf32>
    %9 = arith.maximumf %7, %8 : vector<8x64xf32>
    %c0_8 = arith.constant 0 : index
    %c0_9 = arith.constant 0 : index
    %10 = vector.load %arg3[%c0_8, %c0_9] : memref<64x128xf32, #tpu.memory_space<vmem>>, vector<64x128xf32>
    %cst_10 = arith.constant dense<0.000000e+00> : vector<8x128xf32>
    %11 = tpu.matmul %9, %10, %cst_10 {dimension_numbers = #tpu.dot_dimension_numbers<[1], [0], [0], [1], [0, 0, 1, 1], [], []>} : vector<8x64xf32>, vector<64x128xf32>, vector<8x128xf32> -> vector<8x128xf32>
    %12 = vector.broadcast %2 : vector<1x128xf32> to vector<8x128xf32>
    %13 = arith.addf %11, %12 : vector<8x128xf32>
    %cst_11 = arith.constant 0.000000e+00 : f32
    %14 = vector.broadcast %cst_11 : f32 to vector<8x128xf32>
    %15 = arith.maximumf %13, %14 : vector<8x128xf32>
    %c0_12 = arith.constant 0 : index
    %c0_13 = arith.constant 0 : index
    %16 = vector.load %arg4[%c0_12, %c0_13] : memref<128x32xf32, #tpu.memory_space<vmem>>, vector<128x32xf32>
    %cst_14 = arith.constant dense<0.000000e+00> : vector<8x32xf32>
    %17 = tpu.matmul %15, %16, %cst_14 {dimension_numbers = #tpu.dot_dimension_numbers<[1], [0], [0], [1], [0, 0, 1, 1], [], []>} : vector<8x128xf32>, vector<128x32xf32>, vector<8x32xf32> -> vector<8x32xf32>
    %18 = vector.broadcast %3 : vector<1x32xf32> to vector<8x32xf32>
    %19 = arith.addf %17, %18 : vector<8x32xf32>
    %c0_15 = arith.constant 0 : index
    %c0_16 = arith.constant 0 : index
    %20 = vector.load %arg6[%c0_15, %c0_16] : memref<8x32xf32, #tpu.memory_space<vmem>>, vector<8x32xf32>
    tpu.vector_store %arg6[%c0_15, %c0_16], %19 {strides = array<i32>} : memref<8x32xf32, #tpu.memory_space<vmem>>, vector<8x32xf32>,
    return
  }
  func.func @transform_0(%arg0: i32) -> (i32, i32) {
    %c0_i32 = arith.constant 0 : i32
    %c0_i32_0 = arith.constant 0 : i32
    return %arg0, %c0_i32 : i32, i32
  }
  func.func @transform_1(%arg0: i32) -> (i32, i32) {
    %c0_i32 = arith.constant 0 : i32
    %c0_i32_0 = arith.constant 0 : i32
    %c0_i32_1 = arith.constant 0 : i32
    return %c0_i32, %c0_i32_0 : i32, i32
  }
  func.func @transform_2(%arg0: i32) -> (i32, i32) {
    %c0_i32 = arith.constant 0 : i32
    %c0_i32_0 = arith.constant 0 : i32
    %c0_i32_1 = arith.constant 0 : i32
    return %c0_i32, %c0_i32_0 : i32, i32
  }
  func.func @transform_3(%arg0: i32) -> (i32, i32) {
    %c0_i32 = arith.constant 0 : i32
    %c0_i32_0 = arith.constant 0 : i32
    %c0_i32_1 = arith.constant 0 : i32
    return %c0_i32, %c0_i32_0 : i32, i32
  }
  func.func @transform_4(%arg0: i32) -> (i32, i32) {
    %c0_i32 = arith.constant 0 : i32
    %c0_i32_0 = arith.constant 0 : i32
    %c0_i32_1 = arith.constant 0 : i32
    return %c0_i32, %c0_i32_0 : i32, i32
  }
  func.func @transform_5(%arg0: i32) -> (i32, i32) {
    %c0_i32 = arith.constant 0 : i32
    %c0_i32_0 = arith.constant 0 : i32
    return %arg0, %c0_i32 : i32, i32
  }
}

</mosaic_0001>

<llo_original>
// kernel: point_decoder_forward.1
$region0: #{point_decoder_forward.1}
  #allocation0 [shape = 'u32[]', space=smem, size = 0x4, offset = 0x4, fixed_abs, tag = 'smem constant byte address 0x4 - core index']
  #allocation1 [shape = 'u32[144,128]{1,0:T(1,128)}', space=vmem, size = 0x12000, scoped, tag = 'internal scratch']
  %s0 = inlined_call_operand.vmem [shape: f32[8,32], index: 0, kind: input, shape index: {}]
  %s1 = inlined_call_operand.vmem [shape: f32[32,64], index: 1, kind: input, shape index: {}]
  %s2 = inlined_call_operand.vmem [shape: f32[64,128], index: 2, kind: input, shape index: {}]
  %s3 = inlined_call_operand.vmem [shape: f32[128,32], index: 3, kind: input, shape index: {}]
  %s4 = inlined_call_operand.vmem [shape: f32[3,128], index: 4, kind: input, shape index: {}]
  %s5 = inlined_call_operand.vmem [shape: f32[8,32], index: 5, kind: output, shape index: {}]
  %s6 = sld [smem:[#allocation0]]
  $region30: #{point_decoder_forward.1} parent=0
    _
  %s8 = ssub.s32 1, %s6
  %s9 = scalar_select 0, %s8, %s6
  // Predicated region
  $region2: #{point_decoder_forward.1} parent=0 // pred_check
    _
  $region3: #{point_decoder_forward.1} parent=0 // pred_check_branch
    %11 = sbr.rel (0) target = $region5
  $region4: #{point_decoder_forward.1} parent=0 // pred_region
    _
  $region5: #{point_decoder_forward.1} parent=0 // pred_fallthru
    _
  // Predicated region
  $region6: #{point_decoder_forward.1} parent=0 // pred_check
    _
  $region7: #{point_decoder_forward.1} parent=0 // pred_check_branch
    %13 = sbr.rel (0) target = $region9
  $region8: #{point_decoder_forward.1} parent=0 // pred_region
    _
  $region9: #{point_decoder_forward.1} parent=0 // pred_fallthru
    _
  // Predicated region
  $region10: #{point_decoder_forward.1} parent=0 // pred_check
    _
  $region11: #{point_decoder_forward.1} parent=0 // pred_check_branch
    %15 = sbr.rel (0) target = $region13
  $region12: #{point_decoder_forward.1} parent=0 // pred_region
    _
  $region13: #{point_decoder_forward.1} parent=0 // pred_fallthru
    _
  // Predicated region
  $region14: #{point_decoder_forward.1} parent=0 // pred_check
    _
  $region15: #{point_decoder_forward.1} parent=0 // pred_check_branch
    %17 = sbr.rel (0) target = $region17
  $region16: #{point_decoder_forward.1} parent=0 // pred_region
    _
  $region17: #{point_decoder_forward.1} parent=0 // pred_fallthru
    _
  // Predicated region
  $region18: #{point_decoder_forward.1} parent=0 // pred_check
    _
  $region19: #{point_decoder_forward.1} parent=0 // pred_check_branch
    %19 = sbr.rel (0) target = $region21
  $region20: #{point_decoder_forward.1} parent=0 // pred_region
    _
  $region21: #{point_decoder_forward.1} parent=0 // pred_fallthru
    _
  %v20 = vld [vmem:[%s0] sm:$0xff]
  %v21 = vld [vmem:[%s4] sm:$0x1]
  %v22 = vld [vmem:[%s4 + $0x1] sm:$0x1]
  %v23 = vld [vmem:[%s4 + $0x2] sm:$0x1]
  %v24 = vld [vmem:[%s1] sm:$0xff]
  %v25 = vld [vmem:[%s1 + $0x8] sm:$0xff]
  %v26 = vld [vmem:[%s1 + $0x10] sm:$0xff]
  %v27 = vld [vmem:[%s1 + $0x18] sm:$0xff]
  %v28 = vlaneseq
  %v29 = vshrl.u32 %v28, 7
  %v30 = vsub.s32 0, %v29
  %v31 = vrot.slane %v21, %v30
  %vm32 = vcmask 261120
  %v34 = vsel %vm32, %v20, 0
  %36 = vmatprep.subr.mxu0 0.0
  %37 = vmatpush1.msra.mxu0 %v24
  %38 = vmatprep.subr.mxu0 0.0
  %39 = vmatpush1.msra.mxu0 %v25
  %40 = vmatprep.subr.mxu0 0.0
  %41 = vmatpush1.msra.mxu0 %v26
  %42 = vmatprep.subr.mxu0 0.0
  %43 = vmatpush1.msra.mxu0 %v27
  %44 = vmatprep.subr.mxu0 0.0
  %45 = vmatpush1.msra.mxu0 0.0
  %46 = vmatprep.subr.mxu0 0.0
  %47 = vmatpush1.msra.mxu0 0.0
  %48 = vmatprep.subr.mxu0 0.0
  %49 = vmatpush1.msra.mxu0 0.0
  %50 = vmatprep.subr.mxu0 0.0
  %51 = vmatpush1.msra.mxu0 0.0
  %52 = vmatprep.subr.mxu0 0.0
  %53 = vmatpush1.msra.mxu0 0.0
  %54 = vmatprep.subr.mxu0 0.0
  %55 = vmatpush1.msra.mxu0 0.0
  %56 = vmatprep.subr.mxu0 0.0
  %57 = vmatpush1.msra.mxu0 0.0
  %58 = vmatprep.subr.mxu0 0.0
  %59 = vmatpush1.msra.mxu0 0.0
  %60 = vmatprep.subr.mxu0 0.0
  %61 = vmatpush1.msra.mxu0 0.0
  %62 = vmatprep.subr.mxu0 0.0
  %63 = vmatpush1.msra.mxu0 0.0
  %64 = vmatprep.subr.mxu0 0.0
  %65 = vmatpush1.msra.mxu0 0.0
  %66 = vmatprep.subr.mxu0 0.0
  %67 = vmatpush1.msra.mxu0 0.0
  %68 = vmatprep.subr.mxu0 0.0
  %69 = vmatpush1.msra.mxu0 0.0
  %70 = vmatprep.subr.mxu0 0.0
  %71 = vmatpush1.msra.mxu0 0.0
  %72 = vmatprep.subr.mxu0 0.0
  %73 = vmatpush1.msra.mxu0 0.0
  %74 = vmatprep.subr.mxu0 0.0
  %75 = vmatpush1.msra.mxu0 0.0
  %76 = vmatprep.subr.mxu0 0.0
  %77 = vmatpush1.msra.mxu0 0.0
  %78 = vmatprep.subr.mxu0 0.0
  %79 = vmatpush1.msra.mxu0 0.0
  %80 = vmatprep.subr.mxu0 0.0
  %81 = vmatpush1.msra.mxu0 0.0
  %82 = vmatprep.subr.mxu0 0.0
  %83 = vmatpush1.msra.mxu0 0.0
  %84 = vmatprep.subr.mxu0 0.0
  %85 = vmatpush1.msra.mxu0 0.0
  %86 = vmatprep.subr.mxu0 0.0
  %87 = vmatpush1.msra.mxu0 0.0
  %88 = vmatprep.subr.mxu0 0.0
  %89 = vmatpush1.msra.mxu0 0.0
  %90 = vmatprep.subr.mxu0 0.0
  %91 = vmatpush1.msra.mxu0 0.0
  %92 = vmatprep.subr.mxu0 0.0
  %93 = vmatpush1.msra.mxu0 0.0
  %94 = vmatprep.subr.mxu0 0.0
  %95 = vmatpush1.msra.mxu0 0.0
  %96 = vmatprep.subr.mxu0 0.0
  %97 = vmatpush1.msra.mxu0 0.0
  %98 = vmatprep.subr.mxu0 0.0
  %99 = vmatpush1.msra.mxu0 0.0
  %100 = vmatprep.mubr.f32.mxu0 0.0
  %101 = vmatmul.mubr.f32.gmra.mrb[0].mxu0 %v34
  %v102 = vpop.f32.mrb[0].mxu0
  %v103 = vadd.f32 %v31, %v102
  %v104 = vpop.f32.mrb[0].mxu0
  %105 = vdwg.mxu0
  %v106 = vmax.f32 %v103, 0.0
  %v107 = vld [vmem:[%s2] sm:$0xff]
  %v108 = vld [vmem:[%s2 + $0x8] sm:$0xff]
  %v109 = vld [vmem:[%s2 + $0x10] sm:$0xff]
  %v110 = vld [vmem:[%s2 + $0x18] sm:$0xff]
  %v111 = vld [vmem:[%s2 + $0x20] sm:$0xff]
  %v112 = vld [vmem:[%s2 + $0x28] sm:$0xff]
  %v113 = vld [vmem:[%s2 + $0x30] sm:$0xff]
  %v114 = vld [vmem:[%s2 + $0x38] sm:$0xff]
  %v115 = vlaneseq
  %v116 = vshrl.u32 %v115, 7
  %v117 = vsub.s32 0, %v116
  %v118 = vrot.slane %v22, %v117
  %vm119 = vcmask 523264
  %v121 = vsel %vm119, %v106, 0
  %123 = vmatprep.subr.mxu0 0.0
  %124 = vmatpush1.msra.mxu0 %v107
  %125 = vmatprep.subr.mxu0 0.0
  %126 = vmatpush1.msra.mxu0 %v108
  %127 = vmatprep.subr.mxu0 0.0
  %128 = vmatpush1.msra.mxu0 %v109
  %129 = vmatprep.subr.mxu0 0.0
  %130 = vmatpush1.msra.mxu0 %v110
  %131 = vmatprep.subr.mxu0 0.0
  %132 = vmatpush1.msra.mxu0 %v111
  %133 = vmatprep.subr.mxu0 0.0
  %134 = vmatpush1.msra.mxu0 %v112
  %135 = vmatprep.subr.mxu0 0.0
  %136 = vmatpush1.msra.mxu0 %v113
  %137 = vmatprep.subr.mxu0 0.0
  %138 = vmatpush1.msra.mxu0 %v114
  %139 = vmatprep.subr.mxu0 0.0
  %140 = vmatpush1.msra.mxu0 0.0
  %141 = vmatprep.subr.mxu0 0.0
  %142 = vmatpush1.msra.mxu0 0.0
  %143 = vmatprep.subr.mxu0 0.0
  %144 = vmatpush1.msra.mxu0 0.0
  %145 = vmatprep.subr.mxu0 0.0
  %146 = vmatpush1.msra.mxu0 0.0
  %147 = vmatprep.subr.mxu0 0.0
  %148 = vmatpush1.msra.mxu0 0.0
  %149 = vmatprep.subr.mxu0 0.0
  %150 = vmatpush1.msra.mxu0 0.0
  %151 = vmatprep.subr.mxu0 0.0
  %152 = vmatpush1.msra.mxu0 0.0
  %153 = vmatprep.subr.mxu0 0.0
  %154 = vmatpush1.msra.mxu0 0.0
  %155 = vmatprep.subr.mxu0 0.0
  %156 = vmatpush1.msra.mxu0 0.0
  %157 = vmatprep.subr.mxu0 0.0
  %158 = vmatpush1.msra.mxu0 0.0
  %159 = vmatprep.subr.mxu0 0.0
  %160 = vmatpush1.msra.mxu0 0.0
  %161 = vmatprep.subr.mxu0 0.0
  %162 = vmatpush1.msra.mxu0 0.0
  %163 = vmatprep.subr.mxu0 0.0
  %164 = vmatpush1.msra.mxu0 0.0
  %165 = vmatprep.subr.mxu0 0.0
  %166 = vmatpush1.msra.mxu0 0.0
  %167 = vmatprep.subr.mxu0 0.0
  %168 = vmatpush1.msra.mxu0 0.0
  %169 = vmatprep.subr.mxu0 0.0
  %170 = vmatpush1.msra.mxu0 0.0
  %171 = vmatprep.subr.mxu0 0.0
  %172 = vmatpush1.msra.mxu0 0.0
  %173 = vmatprep.subr.mxu0 0.0
  %174 = vmatpush1.msra.mxu0 0.0
  %175 = vmatprep.subr.mxu0 0.0
  %176 = vmatpush1.msra.mxu0 0.0
  %177 = vmatprep.subr.mxu0 0.0
  %178 = vmatpush1.msra.mxu0 0.0
  %179 = vmatprep.subr.mxu0 0.0
  %180 = vmatpush1.msra.mxu0 0.0
  %181 = vmatprep.subr.mxu0 0.0
  %182 = vmatpush1.msra.mxu0 0.0
  %183 = vmatprep.subr.mxu0 0.0
  %184 = vmatpush1.msra.mxu0 0.0
  %185 = vmatprep.subr.mxu0 0.0
  %186 = vmatpush1.msra.mxu0 0.0
  %187 = vmatprep.mubr.f32.mxu0 0.0
  %188 = vmatmul.mubr.f32.gmra.mrb[0].mxu0 %v121
  %v189 = vpop.f32.mrb[0].mxu0
  %v190 = vadd.f32 %v118, %v189
  %v191 = vpop.f32.mrb[0].mxu0
  %192 = vdwg.mxu0
  %v193 = vmax.f32 %v190, 0.0
  %v194 = vld [vmem:[%s3] sm:$0xff]
  %v195 = vld [vmem:[%s3 + $0x8] sm:$0xff]
  %v196 = vld [vmem:[%s3 + $0x10] sm:$0xff]
  %v197 = vld [vmem:[%s3 + $0x18] sm:$0xff]
  %v198 = vld [vmem:[%s3 + $0x20] sm:$0xff]
  %v199 = vld [vmem:[%s3 + $0x28] sm:$0xff]
  %v200 = vld [vmem:[%s3 + $0x30] sm:$0xff]
  %v201 = vld [vmem:[%s3 + $0x38] sm:$0xff]
  %v202 = vld [vmem:[%s3 + $0x40] sm:$0xff]
  %v203 = vld [vmem:[%s3 + $0x48] sm:$0xff]
  %v204 = vld [vmem:[%s3 + $0x50] sm:$0xff]
  %v205 = vld [vmem:[%s3 + $0x58] sm:$0xff]
  %v206 = vld [vmem:[%s3 + $0x60] sm:$0xff]
  %v207 = vld [vmem:[%s3 + $0x68] sm:$0xff]
  %v208 = vld [vmem:[%s3 + $0x70] sm:$0xff]
  %v209 = vld [vmem:[%s3 + $0x78] sm:$0xff]
  %v210 = vlaneseq
  %v211 = vshrl.u32 %v210, 7
  %v212 = vsub.s32 0, %v211
  %v213 = vrot.slane %v23, %v212
  %214 = vmatprep.subr.mxu0 0.0
  %215 = vmatpush1.msra.mxu0 %v194
  %216 = vmatprep.subr.mxu0 0.0
  %217 = vmatpush1.msra.mxu0 %v195
  %218 = vmatprep.subr.mxu0 0.0
  %219 = vmatpush1.msra.mxu0 %v196
  %220 = vmatprep.subr.mxu0 0.0
  %221 = vmatpush1.msra.mxu0 %v197
  %222 = vmatprep.subr.mxu0 0.0
  %223 = vmatpush1.msra.mxu0 %v198
  %224 = vmatprep.subr.mxu0 0.0
  %225 = vmatpush1.msra.mxu0 %v199
  %226 = vmatprep.subr.mxu0 0.0
  %227 = vmatpush1.msra.mxu0 %v200
  %228 = vmatprep.subr.mxu0 0.0
  %229 = vmatpush1.msra.mxu0 %v201
  %230 = vmatprep.subr.mxu0 0.0
  %231 = vmatpush1.msra.mxu0 %v202
  %232 = vmatprep.subr.mxu0 0.0
  %233 = vmatpush1.msra.mxu0 %v203
  %234 = vmatprep.subr.mxu0 0.0
  %235 = vmatpush1.msra.mxu0 %v204
  %236 = vmatprep.subr.mxu0 0.0
  %237 = vmatpush1.msra.mxu0 %v205
  %238 = vmatprep.subr.mxu0 0.0
  %239 = vmatpush1.msra.mxu0 %v206
  %240 = vmatprep.subr.mxu0 0.0
  %241 = vmatpush1.msra.mxu0 %v207
  %242 = vmatprep.subr.mxu0 0.0
  %243 = vmatpush1.msra.mxu0 %v208
  %244 = vmatprep.subr.mxu0 0.0
  %245 = vmatpush1.msra.mxu0 %v209
  %246 = vmatprep.subr.mxu0 0.0
  %247 = vmatpush1.msra.mxu0 0.0
  %248 = vmatprep.subr.mxu0 0.0
  %249 = vmatpush1.msra.mxu0 0.0
  %250 = vmatprep.subr.mxu0 0.0
  %251 = vmatpush1.msra.mxu0 0.0
  %252 = vmatprep.subr.mxu0 0.0
  %253 = vmatpush1.msra.mxu0 0.0
  %254 = vmatprep.subr.mxu0 0.0
  %255 = vmatpush1.msra.mxu0 0.0
  %256 = vmatprep.subr.mxu0 0.0
  %257 = vmatpush1.msra.mxu0 0.0
  %258 = vmatprep.subr.mxu0 0.0
  %259 = vmatpush1.msra.mxu0 0.0
  %260 = vmatprep.subr.mxu0 0.0
  %261 = vmatpush1.msra.mxu0 0.0
  %262 = vmatprep.subr.mxu0 0.0
  %263 = vmatpush1.msra.mxu0 0.0
  %264 = vmatprep.subr.mxu0 0.0
  %265 = vmatpush1.msra.mxu0 0.0
  %266 = vmatprep.subr.mxu0 0.0
  %267 = vmatpush1.msra.mxu0 0.0
  %268 = vmatprep.subr.mxu0 0.0
  %269 = vmatpush1.msra.mxu0 0.0
  %270 = vmatprep.subr.mxu0 0.0
  %271 = vmatpush1.msra.mxu0 0.0
  %272 = vmatprep.subr.mxu0 0.0
  %273 = vmatpush1.msra.mxu0 0.0
  %274 = vmatprep.subr.mxu0 0.0
  %275 = vmatpush1.msra.mxu0 0.0
  %276 = vmatprep.subr.mxu0 0.0
  %277 = vmatpush1.msra.mxu0 0.0
  %278 = vmatprep.mubr.f32.mxu0 0.0
  %279 = vmatmul.mubr.f32.gmra.mrb[0].mxu0 %v193
  %v280 = vpop.f32.mrb[0].mxu0
  %v281 = vadd.f32 %v213, %v280
  %v282 = vpop.f32.mrb[0].mxu0
  %283 = vdwg.mxu0
  %284 = vst.msk [vmem:[%s5] sm:$0xff] %vm32, %v281
  // Predicated region
  $region22: #{point_decoder_forward.1} parent=0 // pred_check
    _
  $region23: #{point_decoder_forward.1} parent=0 // pred_check_branch
    %286 = sbr.rel (0) target = $region25
  $region24: #{point_decoder_forward.1} parent=0 // pred_region
    _
  $region25: #{point_decoder_forward.1} parent=0 // pred_fallthru
    _
  // Predicated region
  $region26: #{point_decoder_forward.1} parent=0 // pred_check
    _
  $region27: #{point_decoder_forward.1} parent=0 // pred_check_branch
    %288 = sbr.rel (0) target = $region29
  $region28: #{point_decoder_forward.1} parent=0 // pred_region
    _
  $region29: #{point_decoder_forward.1} parent=0 // pred_fallthru
    _

</llo_original>
